<compile_context>
chip_gen: v7x
topology: tpu7x:2x2x1
jax: 0.10.0
libtpu: 0.0.40
codegen_flags: <defaults>
</compile_context>

<pallas_src>
import functools

import jax
import jax.numpy as jnp
from jax import lax
from jax.experimental import pallas as pl
from jax.experimental.pallas import tpu as pltpu


# ---------------------------------------------------------------------------
# Pallas kernel: one (batch element, D-tile) per grid step.
#   x_ref : (1, D+2, H+2, (W+2)*Cin)  bf16, resident across the D-tile axis
#   h_ref : (1, tD*H, W*Cout)         prev hidden state, lane-dense rows
#   w_ref : (9, (W+2)*Cin, 2*W*Cout)  bf16 band weights (kw + Cin folded into K,
#                                     both gates + W folded into N), BN-scaled
#   b_ref : (1, 2*W*Cout)             f32 folded bias (tiled over W, gates fused)
#   out   : (1, tD*H, W*Cout)
# ---------------------------------------------------------------------------
def _convsru2_kernel(x_ref, h_ref, w_ref, b_ref, out_ref, *, tD, H, W, Cin, Cout):
    Lx = (W + 2) * Cin
    WC = W * Cout
    M = tD * H
    d0 = pl.multiple_of(pl.program_id(1) * tD, tD)     # element offset in padded D

    # 9 taps: kd is a dynamic leading-dim offset into the resident padded-x
    # block (pure addressing), kh is a small static sublane offset.  Each tap
    # is one MXU dot with K=(W+2)*Cin, N=2*W*Cout; 3 independent partial
    # accumulators break the serial add chain between consecutive MXU pushes.
    partials = []
    for kd in range(3):
        acc_kd = jnp.zeros((M, 2 * WC), jnp.float32)
        for kh in range(3):
            patch = x_ref[0, pl.ds(d0 + kd, tD), kh:kh + H, :]       # (tD, H, Lx)
            lhs = patch.reshape(M, Lx)                               # (tD*H, Lx)
            acc_kd = acc_kd + jnp.dot(lhs, w_ref[kd * 3 + kh],
                                      preferred_element_type=jnp.float32)
        partials.append(acc_kd)
    acc = (partials[0] + partials[1]) + partials[2]                  # (M, 2*WC)

    # Epilogue (f32, v5e-safe): bias-add -> ReLU for both gates -> sigmoid on
    # the update gate -> convex blend with the previous hidden state.
    z = jnp.maximum(acc + b_ref[0], 0.0)
    update = jax.nn.sigmoid(z[:, :WC])               # sigmoid(ReLU(BN(conv_u)))
    o = z[:, WC:]                                    # ReLU(BN(conv_o))
    h = h_ref[0].astype(jnp.float32)
    out_ref[0] = (h * (1.0 - update) + o * update).astype(out_ref.dtype)


# ---------------------------------------------------------------------------
# Tile selection: budget the real VMEM residents, keep the accumulator small,
# keep tD*H sublane-legal (multiple of 8) unless tD == D.
# ---------------------------------------------------------------------------
def _round_up(v, m):
    return ((v + m - 1) // m) * m


def _pick_d_tile(D, H, W, Cin, Cout, *, vmem_budget_bytes=24 << 20,
                 acc_budget_bytes=512 << 10):
    Lx = (W + 2) * Cin
    Nout = 2 * W * Cout
    WC = W * Cout
    x_block = (D + 2) * _round_up(H + 2, 16) * _round_up(Lx, 128) * 2   # bf16
    w_block = 9 * _round_up(Lx, 16) * _round_up(Nout, 128) * 2          # bf16
    fixed = 2 * x_block + 2 * w_block                                   # 2 buffers each
    avail = max(vmem_budget_bytes - fixed, 0)

    def ok(t):
        if D % t:
            return False
        if t != D and (t * H) % 8:
            return False                              # sublane-legal block shape
        M = t * H
        if M * Nout * 4 > acc_budget_bytes:
            return False                              # keep acc vreg/VMEM friendly
        hw_out = 2 * 2 * _round_up(M, 8) * _round_up(WC, 128) * 4       # h + out, 2 bufs
        scratch = 6 * _round_up(M, 8) * _round_up(Nout, 128) * 4        # acc/z/patches
        return hw_out + scratch <= avail

    best = None
    for t in range(1, D + 1):
        if ok(t):
            best = t
    if best is None:
        # Fall back to the untiled (always shape-legal) case.
        # TODO(synk): tile H as well for very large volumes.
        best = D
    return best


# ---------------------------------------------------------------------------
# Wrapper: NCDHW -> lane-dense layouts, fold BN, build band weights, tiled call.
# ---------------------------------------------------------------------------
def convsru2_pallas(x_ncdhw, h_ncdhw, params, *, mxu_dtype=jnp.bfloat16,
                    d_tile=None, eps=1e-5):
    N, Cin, D, H, W = x_ncdhw.shape
    Cout = h_ncdhw.shape[1]
    Lx = (W + 2) * Cin
    WC = W * Cout
    Nout = 2 * WC

    def fold(p):
        # Eval-mode BN folded into the conv: scale into weights, rest into bias.
        s = p["gamma"] * lax.rsqrt(p["var"] + eps)                # (Cout,)
        w = p["w"] * s[:, None, None, None, None]                 # (Cout,Cin,3,3,3)
        b = (p["b"] - p["mean"]) * s + p["beta"]
        return w, b

    wu, bu = fold(params["update"])
    wo, bo = fold(params["out"])

    # Band weights: fold the kw taps (and the W sliding window) into the
    # contraction/output dims so each (kd, kh) tap becomes a single matmul.
    #   band[kd,kh][wp*Cin+ci, g*W*Cout + w*Cout + co] = W_g[co,ci,kd,kh,wp-w]
    wg = jnp.stack([wu, wo], axis=0)                              # (2,Cout,Cin,3,3,3)
    wg = jnp.transpose(wg, (0, 3, 4, 5, 2, 1))                    # (2,kd,kh,kw,Cin,Cout)
    kw_idx = jnp.arange(3)[:, None, None]
    wp_idx = jnp.arange(W + 2)[None, :, None]
    w_idx = jnp.arange(W)[None, None, :]
    sel = (wp_idx == w_idx + kw_idx).astype(jnp.float32)          # (3, W+2, W)
    band = jnp.einsum('kpw,gdhkce->dhpcgwe', sel, wg)             # (3,3,W+2,Cin,2,W,Cout)
    band = band.reshape(9, Lx, Nout).astype(mxu_dtype)

    bias = jnp.concatenate([jnp.tile(bu, W), jnp.tile(bo, W)])    # (2*W*Cout,)
    bias = bias.reshape(1, Nout).astype(jnp.float32)

    # Lane-dense inputs: x as (N, D+2, H+2, (W+2)*Cin) bf16 (padding=1 applied
    # here), h as (N, D*H, W*Cout).
    # TODO(synk): accept channels-last inputs / pad in-kernel to avoid these
    #   whole-tensor HBM passes.
    x = jnp.transpose(x_ncdhw.astype(mxu_dtype), (0, 2, 3, 4, 1))
    x = jnp.pad(x, ((0, 0), (1, 1), (1, 1), (1, 1), (0, 0)))
    x = x.reshape(N, D + 2, H + 2, Lx)
    h = jnp.transpose(h_ncdhw, (0, 2, 3, 4, 1)).reshape(N, D * H, WC)

    if d_tile is None:
        d_tile = _pick_d_tile(D, H, W, Cin, Cout)
    tD = d_tile
    assert D % tD == 0, f"d_tile={tD} must divide D={D}"
    assert tD == D or (tD * H) % 8 == 0, \
        f"d_tile*H={tD * H} must be a multiple of 8 (or d_tile == D)"

    kern = functools.partial(_convsru2_kernel, tD=tD, H=H, W=W, Cin=Cin, Cout=Cout)

    # Megacore: shard the batch axis across cores when possible so each core
    # fetches the resident padded-x block exactly once per batch element.
    dims = ("parallel", "arbitrary") if N > 1 else ("arbitrary", "parallel")

    out = pl.pallas_call(
        kern,
        out_shape=jax.ShapeDtypeStruct((N, D * H, WC), h_ncdhw.dtype),
        grid_spec=pltpu.PrefetchScalarGridSpec(
            num_scalar_prefetch=0,
            grid=(N, D // tD),
            in_specs=[
                # Padded x: block index ignores the D-tile axis -> stays
                # resident in VMEM, fetched once per batch element; the kernel
                # slices the halo'd D slab out of it per tap.
                pl.BlockSpec((1, D + 2, H + 2, Lx), lambda n, d: (n, 0, 0, 0)),
                pl.BlockSpec((1, tD * H, WC), lambda n, d: (n, d, 0)),
                pl.BlockSpec((9, Lx, Nout), lambda n, d: (0, 0, 0)),
                pl.BlockSpec((1, Nout), lambda n, d: (0, 0)),
            ],
            out_specs=pl.BlockSpec((1, tD * H, WC), lambda n, d: (n, d, 0)),
        ),
        compiler_params=pltpu.CompilerParams(
            dimension_semantics=dims,
            vmem_limit_bytes=32 * 1024 * 1024),
    )(x, h, band, bias)

    out = out.reshape(N, D, H, W, Cout)
    return jnp.transpose(out, (0, 4, 1, 2, 3))                    # back to NCDHW


# ---------------------------------------------------------------------------
# References.
# ---------------------------------------------------------------------------
def _conv3d_block_ref(x, p, eps=1e-5):
    y = lax.conv_general_dilated(
        x, p["w"], window_strides=(1, 1, 1), padding=[(1, 1)] * 3,
        dimension_numbers=("NCDHW", "OIDHW", "NCDHW"))
    y = y + p["b"][None, :, None, None, None]
    y = (y - p["mean"][None, :, None, None, None]) / \
        jnp.sqrt(p["var"] + eps)[None, :, None, None, None]
    y = y * p["gamma"][None, :, None, None, None] + \
        p["beta"][None, :, None, None, None]
    return jnp.maximum(y, 0.0)


def convsru2_ref(x, h, params):
    """Exact f32 mirror of the PyTorch forward (BatchNorm in eval mode)."""
    update = jax.nn.sigmoid(_conv3d_block_ref(x, params["update"]))
    out_in = _conv3d_block_ref(x, params["out"])
    return h * (1.0 - update) + out_in * update


def convsru2_ref_matched(x, h, params, mxu_dtype=jnp.bfloat16, eps=1e-5):
    """Reference matching the kernel's dtype policy: BN folded into weights,
    conv operands rounded to the MXU dtype, f32 accumulation."""
    def block(p):
        s = p["gamma"] * lax.rsqrt(p["var"] + eps)
        w = (p["w"] * s[:, None, None, None, None]).astype(mxu_dtype)
        b = (p["b"] - p["mean"]) * s + p["beta"]
        y = lax.conv_general_dilated(
            x.astype(mxu_dtype), w, window_strides=(1, 1, 1),
            padding=[(1, 1)] * 3,
            dimension_numbers=("NCDHW", "OIDHW", "NCDHW"),
            preferred_element_type=jnp.float32)
        return jnp.maximum(y + b[None, :, None, None, None], 0.0)

    update = jax.nn.sigmoid(block(params["update"]))
    out_in = block(params["out"])
    return h * (1.0 - update) + out_in * update


# ---------------------------------------------------------------------------
# Deterministic parameter construction (shapes from ConvSRU2.__init__).
# ---------------------------------------------------------------------------
def make_params(key, cin, cout):
    def one_block(k):
        ks = jax.random.split(k, 6)
        return {
            "w": 0.1 * jax.random.normal(ks[0], (cout, cin, 3, 3, 3), jnp.float32),
            "b": 0.1 * jax.random.normal(ks[1], (cout,), jnp.float32),
            "gamma": 1.0 + 0.1 * jax.random.normal(ks[2], (cout,), jnp.float32),
            "beta": 0.1 * jax.random.normal(ks[3], (cout,), jnp.float32),
            "mean": 0.1 * jax.random.normal(ks[4], (cout,), jnp.float32),
            "var": 1.0 + 0.1 * jnp.abs(jax.random.normal(ks[5], (cout,), jnp.float32)),
        }
    k1, k2 = jax.random.split(key)
    return {"update": one_block(k1), "out": one_block(k2)}


if __name__ == "__main__":
    key = jax.random.PRNGKey(0)
    kx, kh, kp = jax.random.split(key, 3)

    N, Cin, Cout = 2, 4, 8
    D, H, W = 4, 8, 8

    x = jax.random.normal(kx, (N, Cin, D, H, W), jnp.float32)
    h = jax.random.normal(kh, (N, Cout, D, H, W), jnp.float32)
    params = make_params(kp, Cin, Cout)

    # d_tile=2 exercises the halo'd D-tiling path: grid = (N, D//tD) = (2, 2).
    out = convsru2_pallas(x, h, params, d_tile=2)
    out = jax.block_until_ready(out)
    assert out.shape == (N, Cout, D, H, W)

    # Tight check vs. a reference with the same dtype policy (bf16 MXU operands,
    # f32 accumulation, folded BN) — verifies band-weight construction,
    # indexing, gate fusion order and gating.
    ref_m = jax.block_until_ready(convsru2_ref_matched(x, h, params))
    assert jnp.allclose(out, ref_m, atol=1e-3, rtol=1e-3), \
        f"matched-ref max err {jnp.max(jnp.abs(out - ref_m))}"

    # Loose semantic check vs. the exact f32 PyTorch mirror — the only
    # difference is bf16 rounding of the MXU operands.
    ref_f = jax.block_until_ready(convsru2_ref(x, h, params))
    assert jnp.max(jnp.abs(out - ref_f)) < 0.1, \
        f"f32-ref max err {jnp.max(jnp.abs(out - ref_f))}"

    print("KERNEL_OK")
</pallas_src>

<mosaic_0001>
module attributes {stable_mosaic.version = 11 : i64} {
  func.func @_convsru2_kernel(%arg0: i32, %arg1: i32, %arg2: memref<1x6x10x40xbf16, #tpu.memory_space<vmem>>, %arg3: memref<1x16x64xf32, #tpu.memory_space<vmem>>, %arg4: memref<9x40x128xbf16, #tpu.memory_space<vmem>>, %arg5: memref<1x128xf32, #tpu.memory_space<vmem>>, %arg6: memref<1x16x64xf32, #tpu.memory_space<vmem>>) attributes {dimension_semantics = [#tpu.dimension_semantics<parallel>, #tpu.dimension_semantics<arbitrary>], iteration_bounds = array<i64: 2, 2>, scalar_prefetch = 0 : i64, scratch_operands = 0 : i64, tpu.core_type = #tpu.core_type<tc>, window_params = [{transform_indices = @transform_0, window_bounds = array<i64: 1, 6, 10, 40>}, {transform_indices = @transform_1, window_bounds = array<i64: 1, 16, 64>}, {pipeline_mode = #tpu.pipeline_mode<synchronous>, transform_indices = @transform_2, window_bounds = array<i64: 9, 40, 128>}, {pipeline_mode = #tpu.pipeline_mode<synchronous>, transform_indices = @transform_3, window_bounds = array<i64: 1, 128>}, {transform_indices = @transform_4, window_bounds = array<i64: 1, 16, 64>}]} {
    %c2_i32 = arith.constant 2 : i32
    %0 = arith.muli %arg1, %c2_i32 : i32
    %1 = tpu.assume_multiple %0, 2 : i32
    %cst = arith.constant 0.000000e+00 : f32
    %2 = vector.broadcast %cst : f32 to vector<16x128xf32>
    %c0_i32 = arith.constant 0 : i32
    %3 = arith.addi %1, %c0_i32 : i32
    %c0 = arith.constant 0 : index
    %4 = arith.index_cast %3 : i32 to index
    %c0_0 = arith.constant 0 : index
    %c0_1 = arith.constant 0 : index
    %5 = vector.load %arg2[%c0, %4, %c0_0, %c0_1] : memref<1x6x10x40xbf16, #tpu.memory_space<vmem>>, vector<1x2x8x40xbf16>
    %6 = vector.shape_cast %5 : vector<1x2x8x40xbf16> to vector<2x8x40xbf16>
    %7 = vector.shape_cast %6 : vector<2x8x40xbf16> to vector<16x40xbf16>
    %c0_2 = arith.constant 0 : index
    %c0_3 = arith.constant 0 : index
    %c0_4 = arith.constant 0 : index
    %8 = vector.load %arg4[%c0_2, %c0_3, %c0_4] : memref<9x40x128xbf16, #tpu.memory_space<vmem>>, vector<1x40x128xbf16>
    %9 = vector.shape_cast %8 : vector<1x40x128xbf16> to vector<40x128xbf16>
    %cst_5 = arith.constant dense<0.000000e+00> : vector<16x128xf32>
    %10 = tpu.matmul %7, %9, %cst_5 {dimension_numbers = #tpu.dot_dimension_numbers<[1], [0], [0], [1], [0, 0, 1, 1], [], []>} : vector<16x40xbf16>, vector<40x128xbf16>, vector<16x128xf32> -> vector<16x128xf32>
    %11 = arith.addf %2, %10 : vector<16x128xf32>
    %c0_i32_6 = arith.constant 0 : i32
    %12 = arith.addi %1, %c0_i32_6 : i32
    %c0_7 = arith.constant 0 : index
    %13 = arith.index_cast %12 : i32 to index
    %c1 = arith.constant 1 : index
    %c0_8 = arith.constant 0 : index
    %14 = vector.load %arg2[%c0_7, %13, %c1, %c0_8] : memref<1x6x10x40xbf16, #tpu.memory_space<vmem>>, vector<1x2x8x40xbf16>
    %15 = vector.shape_cast %14 : vector<1x2x8x40xbf16> to vector<2x8x40xbf16>
    %16 = vector.shape_cast %15 : vector<2x8x40xbf16> to vector<16x40xbf16>
    %c1_9 = arith.constant 1 : index
    %c0_10 = arith.constant 0 : index
    %c0_11 = arith.constant 0 : index
    %17 = vector.load %arg4[%c1_9, %c0_10, %c0_11] : memref<9x40x128xbf16, #tpu.memory_space<vmem>>, vector<1x40x128xbf16>
    %18 = vector.shape_cast %17 : vector<1x40x128xbf16> to vector<40x128xbf16>
    %cst_12 = arith.constant dense<0.000000e+00> : vector<16x128xf32>
    %19 = tpu.matmul %16, %18, %cst_12 {dimension_numbers = #tpu.dot_dimension_numbers<[1], [0], [0], [1], [0, 0, 1, 1], [], []>} : vector<16x40xbf16>, vector<40x128xbf16>, vector<16x128xf32> -> vector<16x128xf32>
    %20 = arith.addf %11, %19 : vector<16x128xf32>
    %c0_i32_13 = arith.constant 0 : i32
    %21 = arith.addi %1, %c0_i32_13 : i32
    %c0_14 = arith.constant 0 : index
    %22 = arith.index_cast %21 : i32 to index
    %c2 = arith.constant 2 : index
    %c0_15 = arith.constant 0 : index
    %23 = vector.load %arg2[%c0_14, %22, %c2, %c0_15] : memref<1x6x10x40xbf16, #tpu.memory_space<vmem>>, vector<1x2x8x40xbf16>
    %24 = vector.shape_cast %23 : vector<1x2x8x40xbf16> to vector<2x8x40xbf16>
    %25 = vector.shape_cast %24 : vector<2x8x40xbf16> to vector<16x40xbf16>
    %c2_16 = arith.constant 2 : index
    %c0_17 = arith.constant 0 : index
    %c0_18 = arith.constant 0 : index
    %26 = vector.load %arg4[%c2_16, %c0_17, %c0_18] : memref<9x40x128xbf16, #tpu.memory_space<vmem>>, vector<1x40x128xbf16>
    %27 = vector.shape_cast %26 : vector<1x40x128xbf16> to vector<40x128xbf16>
    %cst_19 = arith.constant dense<0.000000e+00> : vector<16x128xf32>
    %28 = tpu.matmul %25, %27, %cst_19 {dimension_numbers = #tpu.dot_dimension_numbers<[1], [0], [0], [1], [0, 0, 1, 1], [], []>} : vector<16x40xbf16>, vector<40x128xbf16>, vector<16x128xf32> -> vector<16x128xf32>
    %29 = arith.addf %20, %28 : vector<16x128xf32>
    %cst_20 = arith.constant 0.000000e+00 : f32
    %30 = vector.broadcast %cst_20 : f32 to vector<16x128xf32>
    %c1_i32 = arith.constant 1 : i32
    %31 = arith.addi %1, %c1_i32 : i32
    %c0_21 = arith.constant 0 : index
    %32 = arith.index_cast %31 : i32 to index
    %c0_22 = arith.constant 0 : index
    %c0_23 = arith.constant 0 : index
    %33 = vector.load %arg2[%c0_21, %32, %c0_22, %c0_23] : memref<1x6x10x40xbf16, #tpu.memory_space<vmem>>, vector<1x2x8x40xbf16>
    %34 = vector.shape_cast %33 : vector<1x2x8x40xbf16> to vector<2x8x40xbf16>
    %35 = vector.shape_cast %34 : vector<2x8x40xbf16> to vector<16x40xbf16>
    %c3 = arith.constant 3 : index
    %c0_24 = arith.constant 0 : index
    %c0_25 = arith.constant 0 : index
    %36 = vector.load %arg4[%c3, %c0_24, %c0_25] : memref<9x40x128xbf16, #tpu.memory_space<vmem>>, vector<1x40x128xbf16>
    %37 = vector.shape_cast %36 : vector<1x40x128xbf16> to vector<40x128xbf16>
    %cst_26 = arith.constant dense<0.000000e+00> : vector<16x128xf32>
    %38 = tpu.matmul %35, %37, %cst_26 {dimension_numbers = #tpu.dot_dimension_numbers<[1], [0], [0], [1], [0, 0, 1, 1], [], []>} : vector<16x40xbf16>, vector<40x128xbf16>, vector<16x128xf32> -> vector<16x128xf32>
    %39 = arith.addf %30, %38 : vector<16x128xf32>
    %c1_i32_27 = arith.constant 1 : i32
    %40 = arith.addi %1, %c1_i32_27 : i32
    %c0_28 = arith.constant 0 : index
    %41 = arith.index_cast %40 : i32 to index
    %c1_29 = arith.constant 1 : index
    %c0_30 = arith.constant 0 : index
    %42 = vector.load %arg2[%c0_28, %41, %c1_29, %c0_30] : memref<1x6x10x40xbf16, #tpu.memory_space<vmem>>, vector<1x2x8x40xbf16>
    %43 = vector.shape_cast %42 : vector<1x2x8x40xbf16> to vector<2x8x40xbf16>
    %44 = vector.shape_cast %43 : vector<2x8x40xbf16> to vector<16x40xbf16>
    %c4 = arith.constant 4 : index
    %c0_31 = arith.constant 0 : index
    %c0_32 = arith.constant 0 : index
    %45 = vector.load %arg4[%c4, %c0_31, %c0_32] : memref<9x40x128xbf16, #tpu.memory_space<vmem>>, vector<1x40x128xbf16>
    %46 = vector.shape_cast %45 : vector<1x40x128xbf16> to vector<40x128xbf16>
    %cst_33 = arith.constant dense<0.000000e+00> : vector<16x128xf32>
    %47 = tpu.matmul %44, %46, %cst_33 {dimension_numbers = #tpu.dot_dimension_numbers<[1], [0], [0], [1], [0, 0, 1, 1], [], []>} : vector<16x40xbf16>, vector<40x128xbf16>, vector<16x128xf32> -> vector<16x128xf32>
    %48 = arith.addf %39, %47 : vector<16x128xf32>
    %c1_i32_34 = arith.constant 1 : i32
    %49 = arith.addi %1, %c1_i32_34 : i32
    %c0_35 = arith.constant 0 : index
    %50 = arith.index_cast %49 : i32 to index
    %c2_36 = arith.constant 2 : index
    %c0_37 = arith.constant 0 : index
    %51 = vector.load %arg2[%c0_35, %50, %c2_36, %c0_37] : memref<1x6x10x40xbf16, #tpu.memory_space<vmem>>, vector<1x2x8x40xbf16>
    %52 = vector.shape_cast %51 : vector<1x2x8x40xbf16> to vector<2x8x40xbf16>
    %53 = vector.shape_cast %52 : vector<2x8x40xbf16> to vector<16x40xbf16>
    %c5 = arith.constant 5 : index
    %c0_38 = arith.constant 0 : index
    %c0_39 = arith.constant 0 : index
    %54 = vector.load %arg4[%c5, %c0_38, %c0_39] : memref<9x40x128xbf16, #tpu.memory_space<vmem>>, vector<1x40x128xbf16>
    %55 = vector.shape_cast %54 : vector<1x40x128xbf16> to vector<40x128xbf16>
    %cst_40 = arith.constant dense<0.000000e+00> : vector<16x128xf32>
    %56 = tpu.matmul %53, %55, %cst_40 {dimension_numbers = #tpu.dot_dimension_numbers<[1], [0], [0], [1], [0, 0, 1, 1], [], []>} : vector<16x40xbf16>, vector<40x128xbf16>, vector<16x128xf32> -> vector<16x128xf32>
    %57 = arith.addf %48, %56 : vector<16x128xf32>
    %cst_41 = arith.constant 0.000000e+00 : f32
    %58 = vector.broadcast %cst_41 : f32 to vector<16x128xf32>
    %c2_i32_42 = arith.constant 2 : i32
    %59 = arith.addi %1, %c2_i32_42 : i32
    %c0_43 = arith.constant 0 : index
    %60 = arith.index_cast %59 : i32 to index
    %c0_44 = arith.constant 0 : index
    %c0_45 = arith.constant 0 : index
    %61 = vector.load %arg2[%c0_43, %60, %c0_44, %c0_45] : memref<1x6x10x40xbf16, #tpu.memory_space<vmem>>, vector<1x2x8x40xbf16>
    %62 = vector.shape_cast %61 : vector<1x2x8x40xbf16> to vector<2x8x40xbf16>
    %63 = vector.shape_cast %62 : vector<2x8x40xbf16> to vector<16x40xbf16>
    %c6 = arith.constant 6 : index
    %c0_46 = arith.constant 0 : index
    %c0_47 = arith.constant 0 : index
    %64 = vector.load %arg4[%c6, %c0_46, %c0_47] : memref<9x40x128xbf16, #tpu.memory_space<vmem>>, vector<1x40x128xbf16>
    %65 = vector.shape_cast %64 : vector<1x40x128xbf16> to vector<40x128xbf16>
    %cst_48 = arith.constant dense<0.000000e+00> : vector<16x128xf32>
    %66 = tpu.matmul %63, %65, %cst_48 {dimension_numbers = #tpu.dot_dimension_numbers<[1], [0], [0], [1], [0, 0, 1, 1], [], []>} : vector<16x40xbf16>, vector<40x128xbf16>, vector<16x128xf32> -> vector<16x128xf32>
    %67 = arith.addf %58, %66 : vector<16x128xf32>
    %c2_i32_49 = arith.constant 2 : i32
    %68 = arith.addi %1, %c2_i32_49 : i32
    %c0_50 = arith.constant 0 : index
    %69 = arith.index_cast %68 : i32 to index
    %c1_51 = arith.constant 1 : index
    %c0_52 = arith.constant 0 : index
    %70 = vector.load %arg2[%c0_50, %69, %c1_51, %c0_52] : memref<1x6x10x40xbf16, #tpu.memory_space<vmem>>, vector<1x2x8x40xbf16>
    %71 = vector.shape_cast %70 : vector<1x2x8x40xbf16> to vector<2x8x40xbf16>
    %72 = vector.shape_cast %71 : vector<2x8x40xbf16> to vector<16x40xbf16>
    %c7 = arith.constant 7 : index
    %c0_53 = arith.constant 0 : index
    %c0_54 = arith.constant 0 : index
    %73 = vector.load %arg4[%c7, %c0_53, %c0_54] : memref<9x40x128xbf16, #tpu.memory_space<vmem>>, vector<1x40x128xbf16>
    %74 = vector.shape_cast %73 : vector<1x40x128xbf16> to vector<40x128xbf16>
    %cst_55 = arith.constant dense<0.000000e+00> : vector<16x128xf32>
    %75 = tpu.matmul %72, %74, %cst_55 {dimension_numbers = #tpu.dot_dimension_numbers<[1], [0], [0], [1], [0, 0, 1, 1], [], []>} : vector<16x40xbf16>, vector<40x128xbf16>, vector<16x128xf32> -> vector<16x128xf32>
    %76 = arith.addf %67, %75 : vector<16x128xf32>
    %c2_i32_56 = arith.constant 2 : i32
    %77 = arith.addi %1, %c2_i32_56 : i32
    %c0_57 = arith.constant 0 : index
    %78 = arith.index_cast %77 : i32 to index
    %c2_58 = arith.constant 2 : index
    %c0_59 = arith.constant 0 : index
    %79 = vector.load %arg2[%c0_57, %78, %c2_58, %c0_59] : memref<1x6x10x40xbf16, #tpu.memory_space<vmem>>, vector<1x2x8x40xbf16>
    %80 = vector.shape_cast %79 : vector<1x2x8x40xbf16> to vector<2x8x40xbf16>
    %81 = vector.shape_cast %80 : vector<2x8x40xbf16> to vector<16x40xbf16>
    %c8 = arith.constant 8 : index
    %c0_60 = arith.constant 0 : index
    %c0_61 = arith.constant 0 : index
    %82 = vector.load %arg4[%c8, %c0_60, %c0_61] : memref<9x40x128xbf16, #tpu.memory_space<vmem>>, vector<1x40x128xbf16>
    %83 = vector.shape_cast %82 : vector<1x40x128xbf16> to vector<40x128xbf16>
    %cst_62 = arith.constant dense<0.000000e+00> : vector<16x128xf32>
    %84 = tpu.matmul %81, %83, %cst_62 {dimension_numbers = #tpu.dot_dimension_numbers<[1], [0], [0], [1], [0, 0, 1, 1], [], []>} : vector<16x40xbf16>, vector<40x128xbf16>, vector<16x128xf32> -> vector<16x128xf32>
    %85 = arith.addf %76, %84 : vector<16x128xf32>
    %86 = arith.addf %29, %57 : vector<16x128xf32>
    %87 = arith.addf %86, %85 : vector<16x128xf32>
    %c0_63 = arith.constant 0 : index
    %c0_64 = arith.constant 0 : index
    %88 = vector.load %arg5[%c0_63, %c0_64] : memref<1x128xf32, #tpu.memory_space<vmem>>, vector<1x128xf32>
    %89 = vector.shape_cast %88 : vector<1x128xf32> to vector<128xf32>
    %90 = vector.shape_cast %89 : vector<128xf32> to vector<1x128xf32>
    %91 = vector.broadcast %90 : vector<1x128xf32> to vector<16x128xf32>
    %92 = arith.addf %87, %91 : vector<16x128xf32>
    %cst_65 = arith.constant 0.000000e+00 : f32
    %93 = vector.broadcast %cst_65 : f32 to vector<16x128xf32>
    %94 = arith.maximumf %92, %93 : vector<16x128xf32>
    %95 = vector.extract_strided_slice %94 {offsets = [0, 0], sizes = [16, 64], strides = [1, 1]} : vector<16x128xf32> to vector<16x64xf32>
    %96 = arith.negf %95 : vector<16x64xf32>
    %97 = math.exp %96 : vector<16x64xf32>
    %cst_66 = arith.constant 1.000000e+00 : f32
    %98 = vector.broadcast %cst_66 : f32 to vector<16x64xf32>
    %99 = arith.addf %98, %97 : vector<16x64xf32>
    %100 = arith.divf %98, %99 : vector<16x64xf32>
    %101 = vector.extract_strided_slice %94 {offsets = [0, 64], sizes = [16, 64], strides = [1, 1]} : vector<16x128xf32> to vector<16x64xf32>
    %c0_67 = arith.constant 0 : index
    %c0_68 = arith.constant 0 : index
    %c0_69 = arith.constant 0 : index
    %102 = vector.load %arg3[%c0_67, %c0_68, %c0_69] : memref<1x16x64xf32, #tpu.memory_space<vmem>>, vector<1x16x64xf32>
    %103 = vector.shape_cast %102 : vector<1x16x64xf32> to vector<16x64xf32>
    %cst_70 = arith.constant 1.000000e+00 : f32
    %104 = vector.broadcast %cst_70 : f32 to vector<16x64xf32>
    %105 = arith.subf %104, %100 : vector<16x64xf32>
    %106 = arith.mulf %103, %105 : vector<16x64xf32>
    %107 = arith.mulf %101, %100 : vector<16x64xf32>
    %108 = arith.addf %106, %107 : vector<16x64xf32>
    %c0_71 = arith.constant 0 : index
    %c0_72 = arith.constant 0 : index
    %c0_73 = arith.constant 0 : index
    %109 = vector.load %arg6[%c0_71, %c0_72, %c0_73] : memref<1x16x64xf32, #tpu.memory_space<vmem>>, vector<1x16x64xf32>
    %110 = vector.shape_cast %109 : vector<1x16x64xf32> to vector<16x64xf32>
    %111 = vector.shape_cast %108 : vector<16x64xf32> to vector<1x16x64xf32>
    tpu.vector_store %arg6[%c0_71, %c0_72, %c0_73], %111 {strides = array<i32>} : memref<1x16x64xf32, #tpu.memory_space<vmem>>, vector<1x16x64xf32>,
    return
  }
  func.func @transform_0(%arg0: i32, %arg1: i32) -> (i32, i32, i32, i32) {
    %c0_i32 = arith.constant 0 : i32
    %c0_i32_0 = arith.constant 0 : i32
    %c0_i32_1 = arith.constant 0 : i32
    %c0_i32_2 = arith.constant 0 : i32
    return %arg0, %c0_i32, %c0_i32_0, %c0_i32_1 : i32, i32, i32, i32
  }
  func.func @transform_1(%arg0: i32, %arg1: i32) -> (i32, i32, i32) {
    %c0_i32 = arith.constant 0 : i32
    %c0_i32_0 = arith.constant 0 : i32
    return %arg0, %arg1, %c0_i32 : i32, i32, i32
  }
  func.func @transform_2(%arg0: i32, %arg1: i32) -> (i32, i32, i32) {
    %c0_i32 = arith.constant 0 : i32
    %c0_i32_0 = arith.constant 0 : i32
    %c0_i32_1 = arith.constant 0 : i32
    %c0_i32_2 = arith.constant 0 : i32
    return %c0_i32, %c0_i32_0, %c0_i32_1 : i32, i32, i32
  }
  func.func @transform_3(%arg0: i32, %arg1: i32) -> (i32, i32) {
    %c0_i32 = arith.constant 0 : i32
    %c0_i32_0 = arith.constant 0 : i32
    %c0_i32_1 = arith.constant 0 : i32
    return %c0_i32, %c0_i32_0 : i32, i32
  }
  func.func @transform_4(%arg0: i32, %arg1: i32) -> (i32, i32, i32) {
    %c0_i32 = arith.constant 0 : i32
    %c0_i32_0 = arith.constant 0 : i32
    return %arg0, %arg1, %c0_i32 : i32, i32, i32
  }
}

</mosaic_0001>

<llo_original>
// kernel: tpu_custom_call.1
$region0: #{tpu_custom_call.1}
  #allocation0 [shape = 'u32[]', space=smem, size = 0x4, offset = 0x4, fixed_abs, tag = 'smem constant byte address 0x4 - core index']
  #allocation1 [shape = 'u32[144,128]{1,0:T(1,128)}', space=vmem, size = 0x12000, scoped, tag = 'internal scratch']
  %s0 = inlined_call_operand.vmem [shape: bf16[2,6,10,40], index: 0, kind: input, shape index: {}]
  %s1 = inlined_call_operand.vmem [shape: f32[2,32,64], index: 1, kind: input, shape index: {}]
  %s2 = inlined_call_operand.hbm [shape: bf16[9,40,128], index: 2, kind: input, shape index: {}]
  %s3 = inlined_call_operand.vmem [shape: f32[1,128], index: 3, kind: input, shape index: {}]
  %s4 = inlined_call_operand.hbm [shape: f32[2,32,64], index: 4, kind: output, shape index: {}]
  %s5 = sld [smem:[#allocation0]]
  $region53: #{tpu_custom_call.1} parent=0
    _
  %s7 = ssub.s32 1, %s5
  %s8 = scalar_select 0, %s7, %s5
  $region1: #{tpu_custom_call.1} parent=0
    #allocation2 [shape = 'u8[92160]{0}', space=vmem, size = 0x16800, scoped, tag = 'input window, operand 2, single buffered']
    #allocation3 [shape = 's32[2]{0}', space=sflag, size = 0x8, scoped, tag = 'scoped memory for tpu_custom_call.1']
    #allocation4 [shape = 's32[2]{0}', space=sflag, size = 0x8, scoped, tag = 'scoped memory for tpu_custom_call.1']
    #allocation5 [shape = 'u8[16384]{0}', space=vmem, size = 0x4000, scoped, tag = 'output window, operand 0']
    %9 = vsyncpa [#allocation3], 0
    %10 = vsyncpa [#allocation4], 0
    %s11 = scalar_lea.sflag [#allocation4], 1
    %12 = vsyncpa %s11, 0
    loop: start=0, step=1, limit=6
    $region2: #{tpu_custom_call.1} parent=1 // loop_pre_header
      _
    $region3: #{tpu_custom_call.1} parent=1 // loop_header
      %s14 = sphi 0, %s18
      %p15 = scmp.ge.s32.totalorder %s14, 6
      %s21 = sphi 0, %s33
      %s22 = sphi 0, %s29
      %s23 = sphi 0, %s21
      %s24 = sphi 0, %s22
      %s25 = sphi 0, %s23
      %s26 = sphi 0, %s24
      %s36 = sphi 0, %s38
      %s39 = sphi 0, %s36
      %s40 = sphi 0, %s39
      %s56 = sphi 0, %s40
      %s64 = sphi 0, %s66
      %s67 = sphi 0, %s64
      %s68 = sphi 0, %s67
      %s84 = sphi 0, %s68
      %s88 = sphi 0, %s88
      %s90 = sphi 0, %s88
      %s91 = sphi 0, %s90
      %s105 = sphi 0, %s91
      %s109 = sphi 0, %s109
      %s111 = sphi 0, %s109
      %s112 = sphi 0, %s111
      %s126 = sphi 0, %s112
      %s134 = sphi 0, %s136
      %s137 = sphi 0, %s134
      %s138 = sphi 0, %s137
      %s154 = sphi 0, %s138
    $region4: #{tpu_custom_call.1} parent=1 // loop_header_branch
      %17 = sbr.rel (%p15) target = $region8
    $region5: #{tpu_custom_call.1} parent=1 // loop_body
      %s19 = ssub.s32 %s14, 1
      %s20 = ssub.s32 %s14, 2
      %s27 = sadd.s32 1, %s22
      %p28 = scmp.ge.s32.totalorder %s27, 2
      %s29 = scalar_select %p28, 0, %s27
      %s30 = sadd.s32 1, %s21
      %s31 = scalar_select %p28, %s30, %s21
      %p32 = scmp.ge.s32.totalorder %s31, 2
      %s33 = scalar_select %p32, 0, %s31
      %s34 = ssub.s32 %s21, %s33
      %p35 = scmp.eq.s32.totalorder %s34, 0
      %s37 = sadd.s32 %s36, 1
      %s38 = scalar_select %p35, %s36, %s37
      %p41 = pneg %p35
      %p42 = scmp.eq.s32.totalorder %s14, 3
      %p43 = por %p41, %p42
      %p44 = scmp.ne.s32.totalorder %s36, %s39
      %p45 = scmp.eq.s32.totalorder %s14, 0
      %p46 = por %p44, %p45
      %p47 = scmp.ne.s32.totalorder %s36, %s39
      %p48 = scmp.eq.s32.totalorder %s19, 3
      %p49 = por %p47, %p48
      %p50 = scmp.ne.s32.totalorder %s39, %s40
      %p51 = scmp.eq.s32.totalorder %s19, 0
      %p52 = por %p50, %p51
      %p53 = scmp.ne.s32.totalorder %s39, %s40
      %p54 = scmp.eq.s32.totalorder %s20, 3
      %p55 = por %p53, %p54
      %p57 = scmp.ne.s32.totalorder %s40, %s56
      %p58 = scmp.eq.s32.totalorder %s20, 0
      %p59 = por %p57, %p58
      %s60 = ssub.s32 %s21, %s33
      %s61 = ssub.s32 %s22, %s29
      %s62 = sor.u32 %s60, %s61
      %p63 = scmp.eq.s32.totalorder %s62, 0
      %s65 = sadd.s32 %s64, 1
      %s66 = scalar_select %p63, %s64, %s65
      %p69 = pneg %p63
      %p70 = scmp.eq.s32.totalorder %s14, 3
      %p71 = por %p69, %p70
      %p72 = scmp.ne.s32.totalorder %s64, %s67
      %p73 = scmp.eq.s32.totalorder %s14, 0
      %p74 = por %p72, %p73
      %p75 = scmp.ne.s32.totalorder %s64, %s67
      %p76 = scmp.eq.s32.totalorder %s19, 3
      %p77 = por %p75, %p76
      %p78 = scmp.ne.s32.totalorder %s67, %s68
      %p79 = scmp.eq.s32.totalorder %s19, 0
      %p80 = por %p78, %p79
      %p81 = scmp.ne.s32.totalorder %s67, %s68
      %p82 = scmp.eq.s32.totalorder %s20, 3
      %p83 = por %p81, %p82
      %p85 = scmp.ne.s32.totalorder %s68, %s84
      %p86 = scmp.eq.s32.totalorder %s20, 0
      %p87 = por %p85, %p86
      %s89 = sadd.s32 %s88, 1
      %p92 = scmp.eq.s32.totalorder %s14, 3
      %p93 = scmp.ne.s32.totalorder %s88, %s90
      %p94 = scmp.eq.s32.totalorder %s14, 0
      %p95 = por %p93, %p94
      %p96 = scmp.ne.s32.totalorder %s88, %s90
      %p97 = scmp.eq.s32.totalorder %s19, 3
      %p98 = por %p96, %p97
      %p99 = scmp.ne.s32.totalorder %s90, %s91
      %p100 = scmp.eq.s32.totalorder %s19, 0
      %p101 = por %p99, %p100
      %p102 = scmp.ne.s32.totalorder %s90, %s91
      %p103 = scmp.eq.s32.totalorder %s20, 3
      %p104 = por %p102, %p103
      %p106 = scmp.ne.s32.totalorder %s91, %s105
      %p107 = scmp.eq.s32.totalorder %s20, 0
      %p108 = por %p106, %p107
      %s110 = sadd.s32 %s109, 1
      %p113 = scmp.eq.s32.totalorder %s14, 3
      %p114 = scmp.ne.s32.totalorder %s109, %s111
      %p115 = scmp.eq.s32.totalorder %s14, 0
      %p116 = por %p114, %p115
      %p117 = scmp.ne.s32.totalorder %s109, %s111
      %p118 = scmp.eq.s32.totalorder %s19, 3
      %p119 = por %p117, %p118
      %p120 = scmp.ne.s32.totalorder %s111, %s112
      %p121 = scmp.eq.s32.totalorder %s19, 0
      %p122 = por %p120, %p121
      %p123 = scmp.ne.s32.totalorder %s111, %s112
      %p124 = scmp.eq.s32.totalorder %s20, 3
      %p125 = por %p123, %p124
      %p127 = scmp.ne.s32.totalorder %s112, %s126
      %p128 = scmp.eq.s32.totalorder %s20, 0
      %p129 = por %p127, %p128
      %s130 = ssub.s32 %s21, %s33
      %s131 = ssub.s32 %s22, %s29
      %s132 = sor.u32 %s130, %s131
      %p133 = scmp.eq.s32.totalorder %s132, 0
      %s135 = sadd.s32 %s134, 1
      %s136 = scalar_select %p133, %s134, %s135
      %p139 = pneg %p133
      %p140 = scmp.eq.s32.totalorder %s14, 3
      %p141 = por %p139, %p140
      %p142 = scmp.ne.s32.totalorder %s134, %s137
      %p143 = scmp.eq.s32.totalorder %s14, 0
      %p144 = por %p142, %p143
      %p145 = scmp.ne.s32.totalorder %s134, %s137
      %p146 = scmp.eq.s32.totalorder %s19, 3
      %p147 = por %p145, %p146
      %p148 = scmp.ne.s32.totalorder %s137, %s138
      %p149 = scmp.eq.s32.totalorder %s19, 0
      %p150 = por %p148, %p149
      %p151 = scmp.ne.s32.totalorder %s137, %s138
      %p152 = scmp.eq.s32.totalorder %s20, 3
      %p153 = por %p151, %p152
      %p155 = scmp.ne.s32.totalorder %s138, %s154
      %p156 = scmp.eq.s32.totalorder %s20, 0
      %p157 = por %p155, %p156
      %p158 = scmp.le.s32.totalorder 1, %s14
      %p159 = scmp.lt.s32.totalorder %s14, 5
      %p160 = pnand %p158, %p159
      %p161 = pneg %p160
      // Predicated region
      $region9: #{tpu_custom_call.1} parent=5 // pred_check
        _
      $region10: #{tpu_custom_call.1} parent=5 // pred_check_branch
        %163 = sbr.rel (%p160) target = $region12
      $region11: #{tpu_custom_call.1} parent=5 // pred_region
        %s164 = ssub.s32 %s14, 1
        // Predicated region
        $region13: #{tpu_custom_call.1} parent=11 // pred_check
          %p165 = pneg %p101
        $region14: #{tpu_custom_call.1} parent=11 // pred_check_branch
          %167 = sbr.rel (%p165) target = $region16
        $region15: #{tpu_custom_call.1} parent=11 // pred_region
          %s169 = ssub.s32 2880, 2880
          %170 = vsyncadd [#allocation3], %s169
          %s171 = sshll.u32 [#allocation2], 4
          %s172 = int_to_ptr.vmem [resolvable:$true] %s171
          %177 = dma.hbm_to_vmem [thread:$0]  %s2, 2880, %s172, [#allocation3], 64, 64, 4
        $region16: #{tpu_custom_call.1} parent=11 // pred_fallthru
          _
        // Predicated region
        $region17: #{tpu_custom_call.1} parent=11 // pred_check
          %p178 = pneg %p122
        $region18: #{tpu_custom_call.1} parent=11 // pred_check_branch
          %180 = sbr.rel (%p178) target = $region20
        $region19: #{tpu_custom_call.1} parent=11 // pred_region
          _
        $region20: #{tpu_custom_call.1} parent=11 // pred_fallthru
          _
      $region12: #{tpu_custom_call.1} parent=5 // pred_fallthru
        _
      %p181 = scmp.lt.s32.totalorder %s14, 4
      // Predicated region
      $region21: #{tpu_custom_call.1} parent=5 // pred_check
        %p182 = pneg %p181
      $region22: #{tpu_custom_call.1} parent=5 // pred_check_branch
        %184 = sbr.rel (%p182) target = $region24
      $region23: #{tpu_custom_call.1} parent=5 // pred_region
        // Predicated region
        $region25: #{tpu_custom_call.1} parent=23 // pred_check
          %p185 = pneg %p46
        $region26: #{tpu_custom_call.1} parent=23 // pred_check_branch
          %187 = sbr.rel (%p185) target = $region28
        $region27: #{tpu_custom_call.1} parent=23 // pred_region
          %p188 = scmp.lt.s32.totalorder %s21, 1
          %s189 = scalar_select %p188, %s21, 1
          %s190 = smul.addr %s189, 12
          %s191 = smul.addr %s190, 4
          %s192 = scalar_lea.vmem %s0, %s191
        $region28: #{tpu_custom_call.1} parent=23 // pred_fallthru
          _
        // Predicated region
        $region29: #{tpu_custom_call.1} parent=23 // pred_check
          %p193 = pneg %p74
        $region30: #{tpu_custom_call.1} parent=23 // pred_check_branch
          %195 = sbr.rel (%p193) target = $region32
        $region31: #{tpu_custom_call.1} parent=23 // pred_region
          %s196 = smul.u32 2, %s22
          %p197 = scmp.lt.s32.totalorder %s21, 1
          %s198 = scalar_select %p197, %s21, 1
          %p199 = scmp.lt.s32.totalorder %s196, 3
          %s200 = scalar_select %p199, %s196, 3
          %s201 = smul.addr %s198, 4
          %s202 = sadd.s32 %s200, %s201
          %s203 = smul.addr %s202, 8
          %s204 = scalar_lea.vmem %s1, %s203
          %s205 = smul.u32 2, %s22
        $region32: #{tpu_custom_call.1} parent=23 // pred_fallthru
          _
      $region24: #{tpu_custom_call.1} parent=5 // pred_fallthru
        _
      %p206 = scmp.le.s32.totalorder 1, %s14
      %p207 = scmp.lt.s32.totalorder %s14, 5
      %p208 = pnand %p206, %p207
      %p209 = pneg %p208
      // Predicated region
      $region33: #{tpu_custom_call.1} parent=5 // pred_check
        _
      $region34: #{tpu_custom_call.1} parent=5 // pred_check_branch
        %211 = sbr.rel (%p208) target = $region36
      $region35: #{tpu_custom_call.1} parent=5 // pred_region
        %s212 = ssub.s32 %s14, 1
        // Predicated region
        $region37: #{tpu_custom_call.1} parent=35 // pred_check
          %p213 = pneg %p101
        $region38: #{tpu_custom_call.1} parent=35 // pred_check_branch
          %215 = sbr.rel (%p213) target = $region40
        $region39: #{tpu_custom_call.1} parent=35 // pred_region
          %216 = dma.done [#allocation3], 2880
        $region40: #{tpu_custom_call.1} parent=35 // pred_fallthru
          _
        %p217 = scmp.lt.s32.totalorder %s23, 1
        %s218 = scalar_select %p217, %s23, 1
        %s219 = smul.addr %s218, 12
        %s220 = smul.addr %s219, 4
        %s221 = scalar_lea.vmem %s0, %s220
        %p222 = pneg %p52
        %p223 = pneg %p49
        %s224 = smul.u32 2, %s24
        %p225 = scmp.lt.s32.totalorder %s23, 1
        %s226 = scalar_select %p225, %s23, 1
        %p227 = scmp.lt.s32.totalorder %s224, 3
        %s228 = scalar_select %p227, %s224, 3
        %s229 = smul.addr %s226, 4
        %s230 = sadd.s32 %s228, %s229
        %s231 = smul.addr %s230, 8
        %s232 = scalar_lea.vmem %s1, %s231
        %p233 = pneg %p80
        %p234 = pneg %p77
        %p235 = pneg %p101
        %p236 = pneg %p98
        %p237 = pneg %p122
        %p238 = pneg %p119
        %p239 = pneg %p150
        %p240 = pneg %p147
        %s241 = sand.u32 %s137, 1
        %s242 = scalar_lea.sflag [#allocation4], %s241
        %s243 = sand.u32 %s137, 1
        %s244 = smul.addr %s243, 16
        %s245 = scalar_lea.vmem [#allocation5], %s244
        %p246 = scmp.lt.s32.totalorder %s23, 1
        %s247 = scalar_select %p246, %s23, 1
        %s248 = smul.addr %s247, 12
        %s249 = smul.addr %s248, 4
        %s250 = scalar_lea.vmem %s0, %s249
        %s251 = smul.u32 2, %s24
        %p252 = scmp.lt.s32.totalorder %s23, 1
        %s253 = scalar_select %p252, %s23, 1
        %p254 = scmp.lt.s32.totalorder %s251, 3
        %s255 = scalar_select %p254, %s251, 3
        %s256 = smul.addr %s253, 4
        %s257 = sadd.s32 %s255, %s256
        %s258 = smul.addr %s257, 8
        %s259 = scalar_lea.vmem %s1, %s258
        %s260 = smul.u32 2, %s24
        %s261 = smul.u32 2, %s24
        %s263 = smul.u32 %s24, 2
        %s264 = smul.u32 %s263, 2
        %s265 = smul.addr %s264, 4
        %s266 = scalar_lea.vmem %s250, %s265
        %v267 = vld [vmem:[%s266] sm:$0xf]
        %v268 = vld [vmem:[%s266 + $0x8] sm:$0xf]
        %v269 = vld [vmem:[#allocation2] sm:$0xf]
        %v270 = vld [vmem:[#allocation2 + $0x4] sm:$0xf]
        %v271 = vld [vmem:[#allocation2 + $0x8] sm:$0xf]
        %v272 = vld [vmem:[#allocation2 + $0xc] sm:$0xf]
        %v273 = vld [vmem:[#allocation2 + $0x10] sm:$0xf]
        %v274 = vld [vmem:[%s266 + $0x4] sm:$0x1]
        %v275 = vld [vmem:[%s266 + $0xc] sm:$0x1]
        %vm276 = vsmask.f32 3328
        %vm277 = vsmask.f32 7440
        %vm278 = vmor %vm276, %vm277
        %v280 = vshrl.u32 %v267, 16
        %v282 = vrot.slane %v280, 4
        %v283 = vshll.u32 %v267, 16
        %v285 = vrot.slane %v283, 5
        %v286 = vor.u32 %v282, %v285
        %v287 = vrot.slane %v286, 4
        %v289 = vshll.u32 %v274, 16
        %v291 = vrot.slane %v289, 5
        %v292 = vsel %vm278, %v287, %v291
        %v294 = vshrl.u32 %v268, 16
        %v296 = vrot.slane %v294, 4
        %v297 = vshll.u32 %v268, 16
        %v299 = vrot.slane %v297, 5
        %v300 = vor.u32 %v296, %v299
        %v301 = vrot.slane %v300, 4
        %v303 = vshll.u32 %v275, 16
        %v305 = vrot.slane %v303, 5
        %v306 = vsel %vm278, %v301, %v305
        %s307 = scalar_lea.vmem [#allocation2], 20
        %v308 = vld [vmem:[%s307] sm:$0xf]
        %v309 = vld [vmem:[%s307 + $0x4] sm:$0xf]
        %v310 = vld [vmem:[%s307 + $0x8] sm:$0xf]
        %v311 = vld [vmem:[%s307 + $0xc] sm:$0xf]
        %v312 = vld [vmem:[%s307 + $0x10] sm:$0xf]
        %v313 = vunpack.c.l.b16 %v292
        %v314 = vunpack.c.l.b16 %v306
        %v315 = vpack.c.b16 %v314, %v313
        %v321 = vunpack.c.l.b16 %v308
        %v322 = vunpack.c.l.b16 %v309
        %v323 = vunpack.c.l.b16 %v310
        %v324 = vunpack.c.l.b16 %v311
        %v325 = vunpack.c.l.b16 %v312
        %v326 = vpack.c.b16 %v322, %v321
        %v327 = vpack.c.b16 %v324, %v323
        %v328 = vpack.c.b16 %v325, %v325
        %vm331 = vcmask 326656
        %v333 = vsel %vm331, %v315, 0
        %vm335 = vcmask 1043456
        %v337 = vsel %vm335, %v328, 0
        %339 = vmatprep.subr.bf16.mxu0 0
        %340 = vmatpush1.bf16.msra.mxu0 %v326
        %341 = vmatprep.subr.bf16.mxu0 0
        %342 = vmatpush1.bf16.msra.mxu0 %v327
        %343 = vmatprep.subr.bf16.mxu0 0
        %344 = vmatpush1.bf16.msra.mxu0 %v337
        %345 = vmatprep.subr.bf16.mxu0 0
        %346 = vmatpush1.bf16.msra.mxu0 0
        %347 = vmatprep.subr.bf16.mxu0 0
        %348 = vmatpush1.bf16.msra.mxu0 0
        %349 = vmatprep.subr.bf16.mxu0 0
        %350 = vmatpush1.bf16.msra.mxu0 0
        %351 = vmatprep.subr.bf16.mxu0 0
        %352 = vmatpush1.bf16.msra.mxu0 0
        %353 = vmatprep.subr.bf16.mxu0 0
        %354 = vmatpush1.bf16.msra.mxu0 0
        %355 = vmatprep.subr.bf16.mxu0 0
        %356 = vmatpush1.bf16.msra.mxu0 0
        %357 = vmatprep.subr.bf16.mxu0 0
        %358 = vmatpush1.bf16.msra.mxu0 0
        %359 = vmatprep.subr.bf16.mxu0 0
        %360 = vmatpush1.bf16.msra.mxu0 0
        %361 = vmatprep.subr.bf16.mxu0 0
        %362 = vmatpush1.bf16.msra.mxu0 0
        %363 = vmatprep.subr.bf16.mxu0 0
        %364 = vmatpush1.bf16.msra.mxu0 0
        %365 = vmatprep.subr.bf16.mxu0 0
        %366 = vmatpush1.bf16.msra.mxu0 0
        %367 = vmatprep.subr.bf16.mxu0 0
        %368 = vmatpush1.bf16.msra.mxu0 0
        %369 = vmatprep.subr.bf16.mxu0 0
        %370 = vmatpush1.bf16.msra.mxu0 0
        %371 = vmatprep.mubr.bf16.mxu0 0
        %372 = vmatmul.mubr.bf16.gmra.mrb[0].mxu0 %v333
        %v373 = vpop.f32.mrb[0].mxu0
        %v374 = vadd.f32 0.0, %v373
        %v375 = vpop.f32.mrb[0].mxu0
        %v376 = vpop.f32.mrb[0].mxu0
        %v377 = vadd.f32 0.0, %v376
        %v378 = vpop.f32.mrb[0].mxu0
        %379 = vdwg.mxu0
        %v382 = vunpack.c.l.b16 %v267
        %v383 = vunpack.c.l.b16 %v268
        %v384 = vpack.c.b16 %v383, %v382
        %v390 = vunpack.c.l.b16 %v269
        %v391 = vunpack.c.l.b16 %v270
        %v392 = vunpack.c.l.b16 %v271
        %v393 = vunpack.c.l.b16 %v272
        %v394 = vunpack.c.l.b16 %v273
        %v395 = vpack.c.b16 %v391, %v390
        %v396 = vpack.c.b16 %v393, %v392
        %v397 = vpack.c.b16 %v394, %v394
        %v401 = vsel %vm331, %v384, 0
        %v404 = vsel %vm335, %v397, 0
        %406 = vmatprep.subr.bf16.mxu0 0
        %407 = vmatpush1.bf16.msra.mxu0 %v395
        %408 = vmatprep.subr.bf16.mxu0 0
        %409 = vmatpush1.bf16.msra.mxu0 %v396
        %410 = vmatprep.subr.bf16.mxu0 0
        %411 = vmatpush1.bf16.msra.mxu0 %v404
        %412 = vmatprep.subr.bf16.mxu0 0
        %413 = vmatpush1.bf16.msra.mxu0 0
        %414 = vmatprep.subr.bf16.mxu0 0
        %415 = vmatpush1.bf16.msra.mxu0 0
        %416 = vmatprep.subr.bf16.mxu0 0
        %417 = vmatpush1.bf16.msra.mxu0 0
        %418 = vmatprep.subr.bf16.mxu0 0
        %419 = vmatpush1.bf16.msra.mxu0 0
        %420 = vmatprep.subr.bf16.mxu0 0
        %421 = vmatpush1.bf16.msra.mxu0 0
        %422 = vmatprep.subr.bf16.mxu0 0
        %423 = vmatpush1.bf16.msra.mxu0 0
        %424 = vmatprep.subr.bf16.mxu0 0
        %425 = vmatpush1.bf16.msra.mxu0 0
        %426 = vmatprep.subr.bf16.mxu0 0
        %427 = vmatpush1.bf16.msra.mxu0 0
        %428 = vmatprep.subr.bf16.mxu0 0
        %429 = vmatpush1.bf16.msra.mxu0 0
        %430 = vmatprep.subr.bf16.mxu0 0
        %431 = vmatpush1.bf16.msra.mxu0 0
        %432 = vmatprep.subr.bf16.mxu0 0
        %433 = vmatpush1.bf16.msra.mxu0 0
        %434 = vmatprep.subr.bf16.mxu0 0
        %435 = vmatpush1.bf16.msra.mxu0 0
        %436 = vmatprep.subr.bf16.mxu0 0
        %437 = vmatpush1.bf16.msra.mxu0 0
        %438 = vmatprep.mubr.bf16.mxu0 0
        %439 = vmatmul.mubr.bf16.gmra.mrb[0].mxu0 %v401
        %v440 = vpop.f32.mrb[0].mxu0
        %v441 = vadd.f32 %v374, %v440
        %v442 = vpop.f32.mrb[0].mxu0
        %v443 = vpop.f32.mrb[0].mxu0
        %v444 = vadd.f32 %v377, %v443
        %v445 = vpop.f32.mrb[0].mxu0
        %446 = vdwg.mxu0
        %v447 = vld [vmem:[%s266] sm:$0xe]
        %v448 = vld [vmem:[%s266 + $0x8] sm:$0xe]
        %vm453 = vcmask 1042432
        %vm454 = vcmask 1046532
        %vm455 = vmor %vm453, %vm454
        %v456 = vrot.slane %v447, 5
        %v457 = vrot.slane %v456, 4
        %v458 = vrot.slane %v274, 5
        %v459 = vsel %vm455, %v457, %v458
        %v460 = vrot.slane %v448, 5
        %v461 = vrot.slane %v460, 4
        %v462 = vrot.slane %v275, 5
        %v463 = vsel %vm455, %v461, %v462
        %s464 = scalar_lea.vmem [#allocation2], 40
        %v465 = vld [vmem:[%s464] sm:$0xf]
        %v466 = vld [vmem:[%s464 + $0x4] sm:$0xf]
        %v467 = vld [vmem:[%s464 + $0x8] sm:$0xf]
        %v468 = vld [vmem:[%s464 + $0xc] sm:$0xf]
        %v469 = vld [vmem:[%s464 + $0x10] sm:$0xf]
        %v470 = vunpack.c.l.b16 %v459
        %v471 = vunpack.c.l.b16 %v463
        %v472 = vpack.c.b16 %v471, %v470
        %v478 = vunpack.c.l.b16 %v465
        %v479 = vunpack.c.l.b16 %v466
        %v480 = vunpack.c.l.b16 %v467
        %v481 = vunpack.c.l.b16 %v468
        %v482 = vunpack.c.l.b16 %v469
        %v483 = vpack.c.b16 %v479, %v478
        %v484 = vpack.c.b16 %v481, %v480
        %v485 = vpack.c.b16 %v482, %v482
        %v489 = vsel %vm331, %v472, 0
        %v492 = vsel %vm335, %v485, 0
        %494 = vmatprep.subr.bf16.mxu0 0
        %495 = vmatpush1.bf16.msra.mxu0 %v483
        %496 = vmatprep.subr.bf16.mxu0 0
        %497 = vmatpush1.bf16.msra.mxu0 %v484
        %498 = vmatprep.subr.bf16.mxu0 0
        %499 = vmatpush1.bf16.msra.mxu0 %v492
        %500 = vmatprep.subr.bf16.mxu0 0
        %501 = vmatpush1.bf16.msra.mxu0 0
        %502 = vmatprep.subr.bf16.mxu0 0
        %503 = vmatpush1.bf16.msra.mxu0 0
        %504 = vmatprep.subr.bf16.mxu0 0
        %505 = vmatpush1.bf16.msra.mxu0 0
        %506 = vmatprep.subr.bf16.mxu0 0
        %507 = vmatpush1.bf16.msra.mxu0 0
        %508 = vmatprep.subr.bf16.mxu0 0
        %509 = vmatpush1.bf16.msra.mxu0 0
        %510 = vmatprep.subr.bf16.mxu0 0
        %511 = vmatpush1.bf16.msra.mxu0 0
        %512 = vmatprep.subr.bf16.mxu0 0
        %513 = vmatpush1.bf16.msra.mxu0 0
        %514 = vmatprep.subr.bf16.mxu0 0
        %515 = vmatpush1.bf16.msra.mxu0 0
        %516 = vmatprep.subr.bf16.mxu0 0
        %517 = vmatpush1.bf16.msra.mxu0 0
        %518 = vmatprep.subr.bf16.mxu0 0
        %519 = vmatpush1.bf16.msra.mxu0 0
        %520 = vmatprep.subr.bf16.mxu0 0
        %521 = vmatpush1.bf16.msra.mxu0 0
        %522 = vmatprep.subr.bf16.mxu0 0
        %523 = vmatpush1.bf16.msra.mxu0 0
        %524 = vmatprep.subr.bf16.mxu0 0
        %525 = vmatpush1.bf16.msra.mxu0 0
        %526 = vmatprep.mubr.bf16.mxu0 0
        %527 = vmatmul.mubr.bf16.gmra.mrb[0].mxu0 %v489
        %v528 = vpop.f32.mrb[0].mxu0
        %v529 = vadd.f32 0.0, %v528
        %v530 = vpop.f32.mrb[0].mxu0
        %v531 = vpop.f32.mrb[0].mxu0
        %v532 = vadd.f32 0.0, %v531
        %v533 = vpop.f32.mrb[0].mxu0
        %534 = vdwg.mxu0
        %v535 = vadd.f32 %v441, %v529
        %v536 = vadd.f32 %v444, %v532
        %s537 = sadd.s32 %s263, 1
        %s538 = smul.u32 %s537, 2
        %s539 = smul.addr %s538, 4
        %s540 = scalar_lea.vmem %s250, %s539
        %v541 = vld [vmem:[%s540] sm:$0xf]
        %v542 = vld [vmem:[%s540 + $0x8] sm:$0xf]
        %s543 = scalar_lea.vmem [#allocation2], 60
        %v544 = vld [vmem:[%s543] sm:$0xf]
        %v545 = vld [vmem:[%s543 + $0x4] sm:$0xf]
        %v546 = vld [vmem:[%s543 + $0x8] sm:$0xf]
        %v547 = vld [vmem:[%s543 + $0xc] sm:$0xf]
        %v548 = vld [vmem:[%s543 + $0x10] sm:$0xf]
        %v549 = vld [vmem:[%s540 + $0x4] sm:$0x1]
        %v550 = vld [vmem:[%s540 + $0xc] sm:$0x1]
        %v552 = vshrl.u32 %v541, 16
        %v554 = vrot.slane %v552, 4
        %v555 = vshll.u32 %v541, 16
        %v557 = vrot.slane %v555, 5
        %v558 = vor.u32 %v554, %v557
        %v559 = vrot.slane %v558, 4
        %v561 = vshll.u32 %v549, 16
        %v563 = vrot.slane %v561, 5
        %v564 = vsel %vm278, %v559, %v563
        %v566 = vshrl.u32 %v542, 16
        %v568 = vrot.slane %v566, 4
        %v569 = vshll.u32 %v542, 16
        %v571 = vrot.slane %v569, 5
        %v572 = vor.u32 %v568, %v571
        %v573 = vrot.slane %v572, 4
        %v575 = vshll.u32 %v550, 16
        %v577 = vrot.slane %v575, 5
        %v578 = vsel %vm278, %v573, %v577
        %s579 = scalar_lea.vmem [#allocation2], 80
        %v580 = vld [vmem:[%s579] sm:$0xf]
        %v581 = vld [vmem:[%s579 + $0x4] sm:$0xf]
        %v582 = vld [vmem:[%s579 + $0x8] sm:$0xf]
        %v583 = vld [vmem:[%s579 + $0xc] sm:$0xf]
        %v584 = vld [vmem:[%s579 + $0x10] sm:$0xf]
        %v585 = vunpack.c.l.b16 %v564
        %v586 = vunpack.c.l.b16 %v578
        %v587 = vpack.c.b16 %v586, %v585
        %v593 = vunpack.c.l.b16 %v580
        %v594 = vunpack.c.l.b16 %v581
        %v595 = vunpack.c.l.b16 %v582
        %v596 = vunpack.c.l.b16 %v583
        %v597 = vunpack.c.l.b16 %v584
        %v598 = vpack.c.b16 %v594, %v593
        %v599 = vpack.c.b16 %v596, %v595
        %v600 = vpack.c.b16 %v597, %v597
        %v604 = vsel %vm331, %v587, 0
        %v607 = vsel %vm335, %v600, 0
        %609 = vmatprep.subr.bf16.mxu0 0
        %610 = vmatpush1.bf16.msra.mxu0 %v598
        %611 = vmatprep.subr.bf16.mxu0 0
        %612 = vmatpush1.bf16.msra.mxu0 %v599
        %613 = vmatprep.subr.bf16.mxu0 0
        %614 = vmatpush1.bf16.msra.mxu0 %v607
        %615 = vmatprep.subr.bf16.mxu0 0
        %616 = vmatpush1.bf16.msra.mxu0 0
        %617 = vmatprep.subr.bf16.mxu0 0
        %618 = vmatpush1.bf16.msra.mxu0 0
        %619 = vmatprep.subr.bf16.mxu0 0
        %620 = vmatpush1.bf16.msra.mxu0 0
        %621 = vmatprep.subr.bf16.mxu0 0
        %622 = vmatpush1.bf16.msra.mxu0 0
        %623 = vmatprep.subr.bf16.mxu0 0
        %624 = vmatpush1.bf16.msra.mxu0 0
        %625 = vmatprep.subr.bf16.mxu0 0
        %626 = vmatpush1.bf16.msra.mxu0 0
        %627 = vmatprep.subr.bf16.mxu0 0
        %628 = vmatpush1.bf16.msra.mxu0 0
        %629 = vmatprep.subr.bf16.mxu0 0
        %630 = vmatpush1.bf16.msra.mxu0 0
        %631 = vmatprep.subr.bf16.mxu0 0
        %632 = vmatpush1.bf16.msra.mxu0 0
        %633 = vmatprep.subr.bf16.mxu0 0
        %634 = vmatpush1.bf16.msra.mxu0 0
        %635 = vmatprep.subr.bf16.mxu0 0
        %636 = vmatpush1.bf16.msra.mxu0 0
        %637 = vmatprep.subr.bf16.mxu0 0
        %638 = vmatpush1.bf16.msra.mxu0 0
        %639 = vmatprep.subr.bf16.mxu0 0
        %640 = vmatpush1.bf16.msra.mxu0 0
        %641 = vmatprep.mubr.bf16.mxu0 0
        %642 = vmatmul.mubr.bf16.gmra.mrb[0].mxu0 %v604
        %v643 = vpop.f32.mrb[0].mxu0
        %v644 = vadd.f32 0.0, %v643
        %v645 = vpop.f32.mrb[0].mxu0
        %v646 = vpop.f32.mrb[0].mxu0
        %v647 = vadd.f32 0.0, %v646
        %v648 = vpop.f32.mrb[0].mxu0
        %649 = vdwg.mxu0
        %v652 = vunpack.c.l.b16 %v541
        %v653 = vunpack.c.l.b16 %v542
        %v654 = vpack.c.b16 %v653, %v652
        %v660 = vunpack.c.l.b16 %v544
        %v661 = vunpack.c.l.b16 %v545
        %v662 = vunpack.c.l.b16 %v546
        %v663 = vunpack.c.l.b16 %v547
        %v664 = vunpack.c.l.b16 %v548
        %v665 = vpack.c.b16 %v661, %v660
        %v666 = vpack.c.b16 %v663, %v662
        %v667 = vpack.c.b16 %v664, %v664
        %v671 = vsel %vm331, %v654, 0
        %v674 = vsel %vm335, %v667, 0
        %676 = vmatprep.subr.bf16.mxu0 0
        %677 = vmatpush1.bf16.msra.mxu0 %v665
        %678 = vmatprep.subr.bf16.mxu0 0
        %679 = vmatpush1.bf16.msra.mxu0 %v666
        %680 = vmatprep.subr.bf16.mxu0 0
        %681 = vmatpush1.bf16.msra.mxu0 %v674
        %682 = vmatprep.subr.bf16.mxu0 0
        %683 = vmatpush1.bf16.msra.mxu0 0
        %684 = vmatprep.subr.bf16.mxu0 0
        %685 = vmatpush1.bf16.msra.mxu0 0
        %686 = vmatprep.subr.bf16.mxu0 0
        %687 = vmatpush1.bf16.msra.mxu0 0
        %688 = vmatprep.subr.bf16.mxu0 0
        %689 = vmatpush1.bf16.msra.mxu0 0
        %690 = vmatprep.subr.bf16.mxu0 0
        %691 = vmatpush1.bf16.msra.mxu0 0
        %692 = vmatprep.subr.bf16.mxu0 0
        %693 = vmatpush1.bf16.msra.mxu0 0
        %694 = vmatprep.subr.bf16.mxu0 0
        %695 = vmatpush1.bf16.msra.mxu0 0
        %696 = vmatprep.subr.bf16.mxu0 0
        %697 = vmatpush1.bf16.msra.mxu0 0
        %698 = vmatprep.subr.bf16.mxu0 0
        %699 = vmatpush1.bf16.msra.mxu0 0
        %700 = vmatprep.subr.bf16.mxu0 0
        %701 = vmatpush1.bf16.msra.mxu0 0
        %702 = vmatprep.subr.bf16.mxu0 0
        %703 = vmatpush1.bf16.msra.mxu0 0
        %704 = vmatprep.subr.bf16.mxu0 0
        %705 = vmatpush1.bf16.msra.mxu0 0
        %706 = vmatprep.subr.bf16.mxu0 0
        %707 = vmatpush1.bf16.msra.mxu0 0
        %708 = vmatprep.mubr.bf16.mxu0 0
        %709 = vmatmul.mubr.bf16.gmra.mrb[0].mxu0 %v671
        %v710 = vpop.f32.mrb[0].mxu0
        %v711 = vadd.f32 %v644, %v710
        %v712 = vpop.f32.mrb[0].mxu0
        %v713 = vpop.f32.mrb[0].mxu0
        %v714 = vadd.f32 %v647, %v713
        %v715 = vpop.f32.mrb[0].mxu0
        %716 = vdwg.mxu0
        %v717 = vld [vmem:[%s540] sm:$0xe]
        %v718 = vld [vmem:[%s540 + $0x8] sm:$0xe]
        %v723 = vrot.slane %v717, 5
        %v724 = vrot.slane %v723, 4
        %v725 = vrot.slane %v549, 5
        %v726 = vsel %vm455, %v724, %v725
        %v727 = vrot.slane %v718, 5
        %v728 = vrot.slane %v727, 4
        %v729 = vrot.slane %v550, 5
        %v730 = vsel %vm455, %v728, %v729
        %s731 = scalar_lea.vmem [#allocation2], 100
        %v732 = vld [vmem:[%s731] sm:$0xf]
        %v733 = vld [vmem:[%s731 + $0x4] sm:$0xf]
        %v734 = vld [vmem:[%s731 + $0x8] sm:$0xf]
        %v735 = vld [vmem:[%s731 + $0xc] sm:$0xf]
        %v736 = vld [vmem:[%s731 + $0x10] sm:$0xf]
        %v737 = vunpack.c.l.b16 %v726
        %v738 = vunpack.c.l.b16 %v730
        %v739 = vpack.c.b16 %v738, %v737
        %v745 = vunpack.c.l.b16 %v732
        %v746 = vunpack.c.l.b16 %v733
        %v747 = vunpack.c.l.b16 %v734
        %v748 = vunpack.c.l.b16 %v735
        %v749 = vunpack.c.l.b16 %v736
        %v750 = vpack.c.b16 %v746, %v745
        %v751 = vpack.c.b16 %v748, %v747
        %v752 = vpack.c.b16 %v749, %v749
        %v756 = vsel %vm331, %v739, 0
        %v759 = vsel %vm335, %v752, 0
        %761 = vmatprep.subr.bf16.mxu0 0
        %762 = vmatpush1.bf16.msra.mxu0 %v750
        %763 = vmatprep.subr.bf16.mxu0 0
        %764 = vmatpush1.bf16.msra.mxu0 %v751
        %765 = vmatprep.subr.bf16.mxu0 0
        %766 = vmatpush1.bf16.msra.mxu0 %v759
        %767 = vmatprep.subr.bf16.mxu0 0
        %768 = vmatpush1.bf16.msra.mxu0 0
        %769 = vmatprep.subr.bf16.mxu0 0
        %770 = vmatpush1.bf16.msra.mxu0 0
        %771 = vmatprep.subr.bf16.mxu0 0
        %772 = vmatpush1.bf16.msra.mxu0 0
        %773 = vmatprep.subr.bf16.mxu0 0
        %774 = vmatpush1.bf16.msra.mxu0 0
        %775 = vmatprep.subr.bf16.mxu0 0
        %776 = vmatpush1.bf16.msra.mxu0 0
        %777 = vmatprep.subr.bf16.mxu0 0
        %778 = vmatpush1.bf16.msra.mxu0 0
        %779 = vmatprep.subr.bf16.mxu0 0
        %780 = vmatpush1.bf16.msra.mxu0 0
        %781 = vmatprep.subr.bf16.mxu0 0
        %782 = vmatpush1.bf16.msra.mxu0 0
        %783 = vmatprep.subr.bf16.mxu0 0
        %784 = vmatpush1.bf16.msra.mxu0 0
        %785 = vmatprep.subr.bf16.mxu0 0
        %786 = vmatpush1.bf16.msra.mxu0 0
        %787 = vmatprep.subr.bf16.mxu0 0
        %788 = vmatpush1.bf16.msra.mxu0 0
        %789 = vmatprep.subr.bf16.mxu0 0
        %790 = vmatpush1.bf16.msra.mxu0 0
        %791 = vmatprep.subr.bf16.mxu0 0
        %792 = vmatpush1.bf16.msra.mxu0 0
        %793 = vmatprep.mubr.bf16.mxu0 0
        %794 = vmatmul.mubr.bf16.gmra.mrb[0].mxu0 %v756
        %v795 = vpop.f32.mrb[0].mxu0
        %v796 = vadd.f32 0.0, %v795
        %v797 = vpop.f32.mrb[0].mxu0
        %v798 = vpop.f32.mrb[0].mxu0
        %v799 = vadd.f32 0.0, %v798
        %v800 = vpop.f32.mrb[0].mxu0
        %801 = vdwg.mxu0
        %v802 = vadd.f32 %v711, %v796
        %v803 = vadd.f32 %v714, %v799
        %s804 = sadd.s32 %s263, 2
        %s805 = smul.u32 %s804, 2
        %s806 = smul.addr %s805, 4
        %s807 = scalar_lea.vmem %s250, %s806
        %v808 = vld [vmem:[%s807] sm:$0xf]
        %v809 = vld [vmem:[%s807 + $0x8] sm:$0xf]
        %s810 = scalar_lea.vmem [#allocation2], 120
        %v811 = vld [vmem:[%s810] sm:$0xf]
        %v812 = vld [vmem:[%s810 + $0x4] sm:$0xf]
        %v813 = vld [vmem:[%s810 + $0x8] sm:$0xf]
        %v814 = vld [vmem:[%s810 + $0xc] sm:$0xf]
        %v815 = vld [vmem:[%s810 + $0x10] sm:$0xf]
        %v816 = vld [vmem:[%s807 + $0x4] sm:$0x1]
        %v817 = vld [vmem:[%s807 + $0xc] sm:$0x1]
        %v819 = vshrl.u32 %v808, 16
        %v821 = vrot.slane %v819, 4
        %v822 = vshll.u32 %v808, 16
        %v824 = vrot.slane %v822, 5
        %v825 = vor.u32 %v821, %v824
        %v826 = vrot.slane %v825, 4
        %v828 = vshll.u32 %v816, 16
        %v830 = vrot.slane %v828, 5
        %v831 = vsel %vm278, %v826, %v830
        %v833 = vshrl.u32 %v809, 16
        %v835 = vrot.slane %v833, 4
        %v836 = vshll.u32 %v809, 16
        %v838 = vrot.slane %v836, 5
        %v839 = vor.u32 %v835, %v838
        %v840 = vrot.slane %v839, 4
        %v842 = vshll.u32 %v817, 16
        %v844 = vrot.slane %v842, 5
        %v845 = vsel %vm278, %v840, %v844
        %s846 = scalar_lea.vmem [#allocation2], 140
        %v847 = vld [vmem:[%s846] sm:$0xf]
        %v848 = vld [vmem:[%s846 + $0x4] sm:$0xf]
        %v849 = vld [vmem:[%s846 + $0x8] sm:$0xf]
        %v850 = vld [vmem:[%s846 + $0xc] sm:$0xf]
        %v851 = vld [vmem:[%s846 + $0x10] sm:$0xf]
        %v852 = vunpack.c.l.b16 %v831
        %v853 = vunpack.c.l.b16 %v845
        %v854 = vpack.c.b16 %v853, %v852
        %v860 = vunpack.c.l.b16 %v847
        %v861 = vunpack.c.l.b16 %v848
        %v862 = vunpack.c.l.b16 %v849
        %v863 = vunpack.c.l.b16 %v850
        %v864 = vunpack.c.l.b16 %v851
        %v865 = vpack.c.b16 %v861, %v860
        %v866 = vpack.c.b16 %v863, %v862
        %v867 = vpack.c.b16 %v864, %v864
        %v871 = vsel %vm331, %v854, 0
        %v874 = vsel %vm335, %v867, 0
        %876 = vmatprep.subr.bf16.mxu0 0
        %877 = vmatpush1.bf16.msra.mxu0 %v865
        %878 = vmatprep.subr.bf16.mxu0 0
        %879 = vmatpush1.bf16.msra.mxu0 %v866
        %880 = vmatprep.subr.bf16.mxu0 0
        %881 = vmatpush1.bf16.msra.mxu0 %v874
        %882 = vmatprep.subr.bf16.mxu0 0
        %883 = vmatpush1.bf16.msra.mxu0 0
        %884 = vmatprep.subr.bf16.mxu0 0
        %885 = vmatpush1.bf16.msra.mxu0 0
        %886 = vmatprep.subr.bf16.mxu0 0
        %887 = vmatpush1.bf16.msra.mxu0 0
        %888 = vmatprep.subr.bf16.mxu0 0
        %889 = vmatpush1.bf16.msra.mxu0 0
        %890 = vmatprep.subr.bf16.mxu0 0
        %891 = vmatpush1.bf16.msra.mxu0 0
        %892 = vmatprep.subr.bf16.mxu0 0
        %893 = vmatpush1.bf16.msra.mxu0 0
        %894 = vmatprep.subr.bf16.mxu0 0
        %895 = vmatpush1.bf16.msra.mxu0 0
        %896 = vmatprep.subr.bf16.mxu0 0
        %897 = vmatpush1.bf16.msra.mxu0 0
        %898 = vmatprep.subr.bf16.mxu0 0
        %899 = vmatpush1.bf16.msra.mxu0 0
        %900 = vmatprep.subr.bf16.mxu0 0
        %901 = vmatpush1.bf16.msra.mxu0 0
        %902 = vmatprep.subr.bf16.mxu0 0
        %903 = vmatpush1.bf16.msra.mxu0 0
        %904 = vmatprep.subr.bf16.mxu0 0
        %905 = vmatpush1.bf16.msra.mxu0 0
        %906 = vmatprep.subr.bf16.mxu0 0
        %907 = vmatpush1.bf16.msra.mxu0 0
        %908 = vmatprep.mubr.bf16.mxu0 0
        %909 = vmatmul.mubr.bf16.gmra.mrb[0].mxu0 %v871
        %v910 = vpop.f32.mrb[0].mxu0
        %v911 = vadd.f32 0.0, %v910
        %v912 = vpop.f32.mrb[0].mxu0
        %v913 = vpop.f32.mrb[0].mxu0
        %v914 = vadd.f32 0.0, %v913
        %v915 = vpop.f32.mrb[0].mxu0
        %916 = vdwg.mxu0
        %v919 = vunpack.c.l.b16 %v808
        %v920 = vunpack.c.l.b16 %v809
        %v921 = vpack.c.b16 %v920, %v919
        %v927 = vunpack.c.l.b16 %v811
        %v928 = vunpack.c.l.b16 %v812
        %v929 = vunpack.c.l.b16 %v813
        %v930 = vunpack.c.l.b16 %v814
        %v931 = vunpack.c.l.b16 %v815
        %v932 = vpack.c.b16 %v928, %v927
        %v933 = vpack.c.b16 %v930, %v929
        %v934 = vpack.c.b16 %v931, %v931
        %v938 = vsel %vm331, %v921, 0
        %v941 = vsel %vm335, %v934, 0
        %943 = vmatprep.subr.bf16.mxu0 0
        %944 = vmatpush1.bf16.msra.mxu0 %v932
        %945 = vmatprep.subr.bf16.mxu0 0
        %946 = vmatpush1.bf16.msra.mxu0 %v933
        %947 = vmatprep.subr.bf16.mxu0 0
        %948 = vmatpush1.bf16.msra.mxu0 %v941
        %949 = vmatprep.subr.bf16.mxu0 0
        %950 = vmatpush1.bf16.msra.mxu0 0
        %951 = vmatprep.subr.bf16.mxu0 0
        %952 = vmatpush1.bf16.msra.mxu0 0
        %953 = vmatprep.subr.bf16.mxu0 0
        %954 = vmatpush1.bf16.msra.mxu0 0
        %955 = vmatprep.subr.bf16.mxu0 0
        %956 = vmatpush1.bf16.msra.mxu0 0
        %957 = vmatprep.subr.bf16.mxu0 0
        %958 = vmatpush1.bf16.msra.mxu0 0
        %959 = vmatprep.subr.bf16.mxu0 0
        %960 = vmatpush1.bf16.msra.mxu0 0
        %961 = vmatprep.subr.bf16.mxu0 0
        %962 = vmatpush1.bf16.msra.mxu0 0
        %963 = vmatprep.subr.bf16.mxu0 0
        %964 = vmatpush1.bf16.msra.mxu0 0
        %965 = vmatprep.subr.bf16.mxu0 0
        %966 = vmatpush1.bf16.msra.mxu0 0
        %967 = vmatprep.subr.bf16.mxu0 0
        %968 = vmatpush1.bf16.msra.mxu0 0
        %969 = vmatprep.subr.bf16.mxu0 0
        %970 = vmatpush1.bf16.msra.mxu0 0
        %971 = vmatprep.subr.bf16.mxu0 0
        %972 = vmatpush1.bf16.msra.mxu0 0
        %973 = vmatprep.subr.bf16.mxu0 0
        %974 = vmatpush1.bf16.msra.mxu0 0
        %975 = vmatprep.mubr.bf16.mxu0 0
        %976 = vmatmul.mubr.bf16.gmra.mrb[0].mxu0 %v938
        %v977 = vpop.f32.mrb[0].mxu0
        %v978 = vadd.f32 %v911, %v977
        %v979 = vpop.f32.mrb[0].mxu0
        %v980 = vpop.f32.mrb[0].mxu0
        %v981 = vadd.f32 %v914, %v980
        %v982 = vpop.f32.mrb[0].mxu0
        %983 = vdwg.mxu0
        %v984 = vld [vmem:[%s807] sm:$0xe]
        %v985 = vld [vmem:[%s807 + $0x8] sm:$0xe]
        %v990 = vrot.slane %v984, 5
        %v991 = vrot.slane %v990, 4
        %v992 = vrot.slane %v816, 5
        %v993 = vsel %vm455, %v991, %v992
        %v994 = vrot.slane %v985, 5
        %v995 = vrot.slane %v994, 4
        %v996 = vrot.slane %v817, 5
        %v997 = vsel %vm455, %v995, %v996
        %s998 = scalar_lea.vmem [#allocation2], 160
        %v999 = vld [vmem:[%s998] sm:$0xf]
        %v1000 = vld [vmem:[%s998 + $0x4] sm:$0xf]
        %v1001 = vld [vmem:[%s998 + $0x8] sm:$0xf]
        %v1002 = vld [vmem:[%s998 + $0xc] sm:$0xf]
        %v1003 = vld [vmem:[%s998 + $0x10] sm:$0xf]
        %v1004 = vunpack.c.l.b16 %v993
        %v1005 = vunpack.c.l.b16 %v997
        %v1006 = vpack.c.b16 %v1005, %v1004
        %v1012 = vunpack.c.l.b16 %v999
        %v1013 = vunpack.c.l.b16 %v1000
        %v1014 = vunpack.c.l.b16 %v1001
        %v1015 = vunpack.c.l.b16 %v1002
        %v1016 = vunpack.c.l.b16 %v1003
        %v1017 = vpack.c.b16 %v1013, %v1012
        %v1018 = vpack.c.b16 %v1015, %v1014
        %v1019 = vpack.c.b16 %v1016, %v1016
        %v1023 = vsel %vm331, %v1006, 0
        %v1026 = vsel %vm335, %v1019, 0
        %1028 = vmatprep.subr.bf16.mxu0 0
        %1029 = vmatpush1.bf16.msra.mxu0 %v1017
        %1030 = vmatprep.subr.bf16.mxu0 0
        %1031 = vmatpush1.bf16.msra.mxu0 %v1018
        %1032 = vmatprep.subr.bf16.mxu0 0
        %1033 = vmatpush1.bf16.msra.mxu0 %v1026
        %1034 = vmatprep.subr.bf16.mxu0 0
        %1035 = vmatpush1.bf16.msra.mxu0 0
        %1036 = vmatprep.subr.bf16.mxu0 0
        %1037 = vmatpush1.bf16.msra.mxu0 0
        %1038 = vmatprep.subr.bf16.mxu0 0
        %1039 = vmatpush1.bf16.msra.mxu0 0
        %1040 = vmatprep.subr.bf16.mxu0 0
        %1041 = vmatpush1.bf16.msra.mxu0 0
        %1042 = vmatprep.subr.bf16.mxu0 0
        %1043 = vmatpush1.bf16.msra.mxu0 0
        %1044 = vmatprep.subr.bf16.mxu0 0
        %1045 = vmatpush1.bf16.msra.mxu0 0
        %1046 = vmatprep.subr.bf16.mxu0 0
        %1047 = vmatpush1.bf16.msra.mxu0 0
        %1048 = vmatprep.subr.bf16.mxu0 0
        %1049 = vmatpush1.bf16.msra.mxu0 0
        %1050 = vmatprep.subr.bf16.mxu0 0
        %1051 = vmatpush1.bf16.msra.mxu0 0
        %1052 = vmatprep.subr.bf16.mxu0 0
        %1053 = vmatpush1.bf16.msra.mxu0 0
        %1054 = vmatprep.subr.bf16.mxu0 0
        %1055 = vmatpush1.bf16.msra.mxu0 0
        %1056 = vmatprep.subr.bf16.mxu0 0
        %1057 = vmatpush1.bf16.msra.mxu0 0
        %1058 = vmatprep.subr.bf16.mxu0 0
        %1059 = vmatpush1.bf16.msra.mxu0 0
        %1060 = vmatprep.mubr.bf16.mxu0 0
        %1061 = vmatmul.mubr.bf16.gmra.mrb[0].mxu0 %v1023
        %v1062 = vpop.f32.mrb[0].mxu0
        %v1063 = vadd.f32 0.0, %v1062
        %v1064 = vpop.f32.mrb[0].mxu0
        %v1065 = vpop.f32.mrb[0].mxu0
        %v1066 = vadd.f32 0.0, %v1065
        %v1067 = vpop.f32.mrb[0].mxu0
        %1068 = vdwg.mxu0
        %v1069 = vadd.f32 %v978, %v1063
        %v1070 = vadd.f32 %v981, %v1066
        %v1071 = vadd.f32 %v535, %v802
        %v1072 = vadd.f32 %v536, %v803
        %v1073 = vadd.f32 %v1071, %v1069
        %v1074 = vadd.f32 %v1072, %v1070
        %v1075 = vld [vmem:[%s3] sm:$0x1]
        %v1077 = vlaneseq
        %v1078 = vshrl.u32 %v1077, 7
        %v1079 = vsub.s32 0, %v1078
        %v1080 = vrot.slane %v1075, %v1079
        %v1082 = vadd.f32 %v1073, %v1080
        %v1083 = vadd.f32 %v1074, %v1080
        %v1084 = vmax.f32 %v1082, 0.0
        %v1085 = vmax.f32 %v1083, 0.0
        %v1086 = vxor.u32 %v1084, 2147483648
        %v1087 = vxor.u32 %v1085, 2147483648
        %v1088 = vmul.f32 %v1086, 1.442695
        %v1089 = vpow.pop %v1088
        %v1090 = vmul.f32 %v1087, 1.442695
        %v1091 = vpow.pop %v1090
        %v1092 = vadd.f32 %v1089, 1.0
        %v1093 = vadd.f32 %v1091, 1.0
        %v1094 = vrcp.pop %v1092
        %v1095 = vmul.f32 1.0, %v1094
        %v1096 = vrcp.pop %v1093
        %v1097 = vmul.f32 1.0, %v1096
        %v1098 = vld [vmem:[%s259] sm:$0xff]
        %v1099 = vld [vmem:[%s259 + $0x8] sm:$0xff]
        %v1100 = vsub.f32 1.0, %v1095
        %v1101 = vsub.f32 1.0, %v1097
        %v1102 = vmul.f32 %v1098, %v1100
        %v1103 = vmul.f32 %v1099, %v1101
        %1106 = vrot.lane.b32.xlu0 %v1095, 64
        %v1107 = vpop.permute.xlu0 %1106
        %1108 = vrot.lane.b32.xlu0 %v1097, 64
        %v1109 = vpop.permute.xlu0 %1108
        %v1112 = vmul.f32 %v1084, %v1107
        %v1113 = vmul.f32 %v1085, %v1109
        %1116 = vrot.lane.b32.xlu0 %v1112, 64
        %v1117 = vpop.permute.xlu0 %1116
        %1118 = vrot.lane.b32.xlu0 %v1113, 64
        %v1119 = vpop.permute.xlu0 %1118
        %v1122 = vadd.f32 %v1102, %v1117
        %v1123 = vadd.f32 %v1103, %v1119
        %vm1124 = vcmask 523264
        %1125 = vst.msk [vmem:[%s245] sm:$0xff] %vm1124, %v1122
        %1126 = vst.msk [vmem:[%s245 + $0x8] sm:$0xff] %vm1124, %v1123
        %s1127 = sand.u32 %s137, 1
        %s1128 = scalar_lea.sflag [#allocation4], %s1127
        %s1129 = sand.u32 %s137, 1
        %s1130 = smul.addr %s1129, 16
        %s1131 = scalar_lea.vmem [#allocation5], %s1130
        // Predicated region
        $region41: #{tpu_custom_call.1} parent=35 // pred_check
          %p1132 = pneg %p147
        $region42: #{tpu_custom_call.1} parent=35 // pred_check_branch
          %1134 = sbr.rel (%p1132) target = $region44
        $region43: #{tpu_custom_call.1} parent=35 // pred_region
          %s1135 = smul.u32 2, %s24
          %s1137 = ssub.s32 256, 256
          %1138 = vsyncadd %s1128, %s1137
          %s1139 = smul.addr %s23, 4
          %s1140 = sadd.s32 %s1135, %s1139
          %s1141 = smul.addr %s1140, 128
          %s1142 = scalar_lea.hbm %s4, %s1141
          %s1143 = sshll.u32 %s1131, 4
          %s1144 = int_to_ptr.vmem [resolvable:$true] %s1143
          %1149 = dma.vmem_to_hbm [thread:$0]  %s1144, 256, %s1142, %s1128, 128, 128, 8
        $region44: #{tpu_custom_call.1} parent=35 // pred_fallthru
          _
      $region36: #{tpu_custom_call.1} parent=5 // pred_fallthru
        _
      %p1150 = scmp.le.s32.totalorder 2, %s14
      // Predicated region
      $region45: #{tpu_custom_call.1} parent=5 // pred_check
        %p1151 = pneg %p1150
      $region46: #{tpu_custom_call.1} parent=5 // pred_check_branch
        %1153 = sbr.rel (%p1151) target = $region48
      $region47: #{tpu_custom_call.1} parent=5 // pred_region
        %s1154 = ssub.s32 %s14, 2
        // Predicated region
        $region49: #{tpu_custom_call.1} parent=47 // pred_check
          %p1155 = pneg %p153
        $region50: #{tpu_custom_call.1} parent=47 // pred_check_branch
          %1157 = sbr.rel (%p1155) target = $region52
        $region51: #{tpu_custom_call.1} parent=47 // pred_region
          %s1158 = sand.u32 %s138, 1
          %s1159 = scalar_lea.sflag [#allocation4], %s1158
          %s1160 = sand.u32 %s138, 1
          %s1161 = smul.addr %s1160, 16
          %s1162 = scalar_lea.vmem [#allocation5], %s1161
          %1163 = dma.done %s1159, 256
        $region52: #{tpu_custom_call.1} parent=47 // pred_fallthru
          _
      $region48: #{tpu_custom_call.1} parent=5 // pred_fallthru
        _
    $region6: #{tpu_custom_call.1} parent=1 // loop_footer
      %s18 = sadd.s32 1, %s14
    $region7: #{tpu_custom_call.1} parent=1 // loop_footer_branch
      %13 = sbr.rel target = $region3
    $region8: #{tpu_custom_call.1} parent=1 // loop_exit
      _
    %1164 = vsyncpa [#allocation3], 1
    %s1165 = scalar_lea.sflag [#allocation3], 1
    %1166 = vsyncpa %s1165, 1
    %1167 = vsyncpa [#allocation4], 1
    %s1168 = scalar_lea.sflag [#allocation4], 1
    %1169 = vsyncpa %s1168, 1

</llo_original>
